<compile_context>
chip_gen: v7x
topology: tpu7x:2x2x1
jax: 0.10.0
libtpu: 0.0.40
codegen_flags: <defaults>
</compile_context>

<pallas_src>
import functools

import numpy as np
import jax
import jax.numpy as jnp
from jax import lax
from jax.experimental import pallas as pl
from jax.experimental.pallas import tpu as pltpu


def _round_up(v, m):
    return ((v + m - 1) // m) * m


# ---------------------------------------------------------------------------
# Pallas kernel
# ---------------------------------------------------------------------------
def _mean_pool_kernel(seg_ref, invlen_ref, x_ref, out_ref, acc_ref,
                      *, n_rows, row_tile, need_mask):
    """One (ei, ni) grid step: accumulate sel @ x for one row tile.

    seg_ref:    (1, TN)     int32   bag id per row; == B for padding rows
    invlen_ref: (Bpad, 1)   float32 1/len per bag (0 for padded bags)
    x_ref:      (TN, TE)    x.dtype row/column tile of the ragged input
    out_ref:    (Bpad, TE)  x.dtype per-bag means (written at last row tile)
    acc_ref:    (Bpad, TE)  float32 VMEM accumulator scratch
    """
    ni = pl.program_id(1)                      # row (reduction) axis, last

    @pl.when(ni == 0)
    def _init():
        acc_ref[...] = jnp.zeros_like(acc_ref)

    bpad = acc_ref.shape[0]
    tn = x_ref.shape[0]

    # Cheapest sel build: compare + select only (no per-element 1/len multiply).
    seg = seg_ref[...]                                        # (1, TN)
    bag = lax.broadcasted_iota(jnp.int32, (bpad, tn), 0)      # (Bpad, TN)
    sel = (seg == bag).astype(x_ref.dtype)                    # 0/1, native dtype

    x = x_ref[...]                                            # (TN, TE)
    if need_mask:
        # Final partial row tile extends past N: pad content is undefined, so
        # zero it explicitly (sel == 0 alone does not guard NaN/Inf * 0).
        row = ni * row_tile + lax.broadcasted_iota(jnp.int32, (tn, 1), 0)
        x = jnp.where(row < n_rows, x, jnp.zeros_like(x))

    # Single MXU matmul per tile, f32 accumulation.
    acc_ref[...] += jnp.dot(sel, x, preferred_element_type=jnp.float32)

    @pl.when(ni == pl.num_programs(1) - 1)
    def _finalize():
        # 1/len scale after the matmul: Bpad*TE f32 muls, exact 1/len.
        out_ref[...] = (acc_ref[...] * invlen_ref[...]).astype(out_ref.dtype)


# ---------------------------------------------------------------------------
# Wrapper
# ---------------------------------------------------------------------------
def mean_pooling(x, lengths, *, row_tile_max=512):
    """Pallas equivalent of MeanPooling.forward(x, lengths).

    lengths are static Python ints (as required by torch.split(x, lengths)).
    Returns (out[B, E] in x.dtype, attention_weights[N] f32).
    """
    N, E = x.shape
    B = len(lengths)
    lengths = [int(l) for l in lengths]
    assert sum(lengths) == N, "lengths must sum to x.shape[0]"
    assert all(l > 0 for l in lengths), "zero-length bag would divide by zero"

    x_dtype = x.dtype
    dtype_bytes = jnp.dtype(x_dtype).itemsize

    # --- tiling --------------------------------------------------------------
    Bpad = _round_up(B, 8)                       # sublane-dense output / MXU M dim
    if N <= row_tile_max:
        # Single row tile: block dims == full array dims (no (8,128) constraint,
        # no masking needed).
        TN, n_tiles, need_mask = N, 1, False
    else:
        TN = row_tile_max                        # multiple of 256 (MXU) and 128 (lanes)
        n_tiles = pl.cdiv(N, TN)
        need_mask = (N % TN) != 0
    if E % 128 == 0:
        TE = min(E, 512)                         # "parallel" column axis (2 TCs on v7x)
        e_tiles = E // TE
    else:
        TE = E                                   # full-dim block (always legal)
        e_tiles = 1

    # --- host-side static prep (lengths are compile-time constants) ----------
    seg_np = np.full((1, n_tiles * TN), B, dtype=np.int32)   # B == "no bag" padding
    off = 0
    for b, l in enumerate(lengths):
        seg_np[0, off:off + l] = b
        off += l
    invlen_np = np.zeros((Bpad, 1), np.float32)
    invlen_np[:B, 0] = [1.0 / float(l) for l in lengths]
    # attention_weights is a static constant -> built host-side, not in-kernel.
    aw_np = np.concatenate(
        [np.full((l,), 1.0 / float(l), np.float32) for l in lengths])

    seg = jnp.asarray(seg_np)
    invlen = jnp.asarray(invlen_np)
    attention_weights = jnp.asarray(aw_np)

    kernel = functools.partial(_mean_pool_kernel, n_rows=N, row_tile=TN,
                               need_mask=need_mask)

    # VMEM budget: double-buffered streams + accumulator + sel, with headroom.
    vmem_bytes = (2 * TN * TE * dtype_bytes      # x (double-buffered)
                  + 2 * TN * 4                   # seg
                  + 2 * Bpad * 4                 # invlen
                  + Bpad * TE * 4                # f32 accumulator scratch
                  + 2 * Bpad * TE * dtype_bytes  # out
                  + Bpad * TN * dtype_bytes)     # sel materialization
    vmem_limit = int(min(max(4 * vmem_bytes, 8 << 20), 64 << 20))

    out_pad = pl.pallas_call(
        kernel,
        grid=(e_tiles, n_tiles),                 # (parallel cols, reduction rows last)
        in_specs=[
            pl.BlockSpec((1, TN), lambda ei, ni: (0, ni)),     # segment ids
            pl.BlockSpec((Bpad, 1), lambda ei, ni: (0, 0)),    # 1/len per bag
            pl.BlockSpec((TN, TE), lambda ei, ni: (ni, ei)),   # x tile (unpadded HBM)
        ],
        out_specs=pl.BlockSpec((Bpad, TE), lambda ei, ni: (0, ei)),
        out_shape=jax.ShapeDtypeStruct((Bpad, E), x_dtype),
        scratch_shapes=[pltpu.VMEM((Bpad, TE), jnp.float32)],
        compiler_params=pltpu.CompilerParams(
            dimension_semantics=("parallel", "arbitrary"),
            vmem_limit_bytes=vmem_limit),
        cost_estimate=pl.CostEstimate(
            flops=2 * Bpad * n_tiles * TN * E,
            transcendentals=0,
            bytes_accessed=(N * E + Bpad * E) * dtype_bytes + n_tiles * TN * 4),
    )(seg, invlen, x)

    return out_pad[:B], attention_weights


# ---------------------------------------------------------------------------
# Pure-JAX reference (exact ragged math) for correctness checking
# ---------------------------------------------------------------------------
def reference(x, lengths):
    outs, aws, off = [], [], 0
    for l in lengths:
        xi = x[off:off + l]
        off += l
        outs.append(jnp.mean(xi, axis=0, keepdims=True))
        aws.append(jnp.full((l,), 1.0 / l, jnp.float32))
    return jnp.concatenate(outs, axis=0), jnp.concatenate(aws)


# ---------------------------------------------------------------------------
if __name__ == "__main__":
    key = jax.random.PRNGKey(0)
    hidden_dim = 128

    # Case 1: small ragged bags, single-tile fast path.
    lengths = (7, 11)                 # sum = 18 rows
    N = sum(lengths)
    x = jax.random.normal(key, (N, hidden_dim), jnp.float32)

    out, attn_w = mean_pooling(x, lengths)
    out = jax.block_until_ready(out)
    attn_w = jax.block_until_ready(attn_w)

    assert out.shape == (len(lengths), hidden_dim)
    assert attn_w.shape == (N,)

    ref_out, ref_aw = reference(x, lengths)
    np.testing.assert_allclose(np.asarray(out), np.asarray(ref_out),
                               rtol=1e-4, atol=1e-5)
    np.testing.assert_allclose(np.asarray(attn_w), np.asarray(ref_aw),
                               rtol=1e-6, atol=1e-6)

    # Case 2: exercise the row-tiled / masked multi-step reduction path.
    lengths2 = (50, 37, 101, 112)     # sum = 300 rows, 300 % 128 != 0
    N2 = sum(lengths2)
    x2 = jax.random.normal(jax.random.PRNGKey(1), (N2, hidden_dim), jnp.float32)

    out2, attn_w2 = mean_pooling(x2, lengths2, row_tile_max=128)
    out2 = jax.block_until_ready(out2)
    attn_w2 = jax.block_until_ready(attn_w2)

    ref_out2, ref_aw2 = reference(x2, lengths2)
    np.testing.assert_allclose(np.asarray(out2), np.asarray(ref_out2),
                               rtol=1e-4, atol=1e-5)
    np.testing.assert_allclose(np.asarray(attn_w2), np.asarray(ref_aw2),
                               rtol=1e-6, atol=1e-6)

    print("KERNEL_OK")
</pallas_src>

<mosaic_0001>
module attributes {stable_mosaic.version = 11 : i64} {
  func.func @_mean_pool_kernel(%arg0: i32, %arg1: i32, %arg2: memref<1x18xi32, #tpu.memory_space<vmem>>, %arg3: memref<8x1xf32, #tpu.memory_space<vmem>>, %arg4: memref<18x128xf32, #tpu.memory_space<vmem>>, %arg5: memref<8x128xf32, #tpu.memory_space<vmem>>, %arg6: memref<8x128xf32, #tpu.memory_space<vmem>>) attributes {dimension_semantics = [#tpu.dimension_semantics<parallel>, #tpu.dimension_semantics<arbitrary>], iteration_bounds = array<i64: 1, 1>, scalar_prefetch = 0 : i64, scratch_operands = 1 : i64, tpu.core_type = #tpu.core_type<tc>, window_params = [{transform_indices = @transform_0, window_bounds = array<i64: 1, 18>}, {pipeline_mode = #tpu.pipeline_mode<synchronous>, transform_indices = @transform_1, window_bounds = array<i64: 8, 1>}, {transform_indices = @transform_2, window_bounds = array<i64: 18, 128>}, {transform_indices = @transform_3, window_bounds = array<i64: 8, 128>}]} {
    %c0_i32 = arith.constant 0 : i32
    %0 = arith.cmpi eq, %arg1, %c0_i32 : i32
    %1 = arith.extui %0 : i1 to i32
    %c0_i32_0 = arith.constant 0 : i32
    %2 = arith.cmpi ne, %1, %c0_i32_0 : i32
    scf.if %2 {
      %cst_10 = arith.constant 0.000000e+00 : f32
      %17 = vector.broadcast %cst_10 : f32 to vector<8x128xf32>
      %c0_11 = arith.constant 0 : index
      %c0_12 = arith.constant 0 : index
      %18 = vector.load %arg6[%c0_11, %c0_12] : memref<8x128xf32, #tpu.memory_space<vmem>>, vector<8x128xf32>
      tpu.vector_store %arg6[%c0_11, %c0_12], %17 {strides = array<i32>} : memref<8x128xf32, #tpu.memory_space<vmem>>, vector<8x128xf32>,
    } else {
    }
    %c0 = arith.constant 0 : index
    %c0_1 = arith.constant 0 : index
    %3 = vector.load %arg2[%c0, %c0_1] : memref<1x18xi32, #tpu.memory_space<vmem>>, vector<1x18xi32>
    %4 = tpu.iota {dimensions = array<i32: 0>} : vector<8x18xi32>
    %5 = vector.broadcast %3 : vector<1x18xi32> to vector<8x18xi32>
    %6 = arith.cmpi eq, %5, %4 : vector<8x18xi32>
    %7 = arith.extui %6 : vector<8x18xi1> to vector<8x18xi32>
    %8 = arith.sitofp %7 : vector<8x18xi32> to vector<8x18xf32>
    %c0_2 = arith.constant 0 : index
    %c0_3 = arith.constant 0 : index
    %9 = vector.load %arg4[%c0_2, %c0_3] : memref<18x128xf32, #tpu.memory_space<vmem>>, vector<18x128xf32>
    %c0_4 = arith.constant 0 : index
    %c0_5 = arith.constant 0 : index
    %10 = vector.load %arg6[%c0_4, %c0_5] : memref<8x128xf32, #tpu.memory_space<vmem>>, vector<8x128xf32>
    %cst = arith.constant dense<0.000000e+00> : vector<8x128xf32>
    %11 = tpu.matmul %8, %9, %cst {dimension_numbers = #tpu.dot_dimension_numbers<[1], [0], [0], [1], [0, 0, 1, 1], [], []>} : vector<8x18xf32>, vector<18x128xf32>, vector<8x128xf32> -> vector<8x128xf32>
    %12 = arith.addf %10, %11 : vector<8x128xf32>
    %c0_6 = arith.constant 0 : index
    %c0_7 = arith.constant 0 : index
    %13 = vector.load %arg6[%c0_6, %c0_7] : memref<8x128xf32, #tpu.memory_space<vmem>>, vector<8x128xf32>
    tpu.vector_store %arg6[%c0_6, %c0_7], %12 {strides = array<i32>} : memref<8x128xf32, #tpu.memory_space<vmem>>, vector<8x128xf32>,
    %c0_i32_8 = arith.constant 0 : i32
    %14 = arith.cmpi eq, %arg1, %c0_i32_8 : i32
    %15 = arith.extui %14 : i1 to i32
    %c0_i32_9 = arith.constant 0 : i32
    %16 = arith.cmpi ne, %15, %c0_i32_9 : i32
    scf.if %16 {
      %c0_10 = arith.constant 0 : index
      %c0_11 = arith.constant 0 : index
      %17 = vector.load %arg6[%c0_10, %c0_11] : memref<8x128xf32, #tpu.memory_space<vmem>>, vector<8x128xf32>
      %c0_12 = arith.constant 0 : index
      %c0_13 = arith.constant 0 : index
      %18 = vector.load %arg3[%c0_12, %c0_13] : memref<8x1xf32, #tpu.memory_space<vmem>>, vector<8x1xf32>
      %19 = vector.broadcast %18 : vector<8x1xf32> to vector<8x128xf32>
      %20 = arith.mulf %17, %19 : vector<8x128xf32>
      %c0_14 = arith.constant 0 : index
      %c0_15 = arith.constant 0 : index
      %21 = vector.load %arg5[%c0_14, %c0_15] : memref<8x128xf32, #tpu.memory_space<vmem>>, vector<8x128xf32>
      tpu.vector_store %arg5[%c0_14, %c0_15], %20 {strides = array<i32>} : memref<8x128xf32, #tpu.memory_space<vmem>>, vector<8x128xf32>,
    } else {
    }
    return
  }
  func.func @transform_0(%arg0: i32, %arg1: i32) -> (i32, i32) {
    %c0_i32 = arith.constant 0 : i32
    %c0_i32_0 = arith.constant 0 : i32
    return %c0_i32, %arg1 : i32, i32
  }
  func.func @transform_1(%arg0: i32, %arg1: i32) -> (i32, i32) {
    %c0_i32 = arith.constant 0 : i32
    %c0_i32_0 = arith.constant 0 : i32
    %c0_i32_1 = arith.constant 0 : i32
    return %c0_i32, %c0_i32_0 : i32, i32
  }
  func.func @transform_2(%arg0: i32, %arg1: i32) -> (i32, i32) {
    %c0_i32 = arith.constant 0 : i32
    return %arg1, %arg0 : i32, i32
  }
  func.func @transform_3(%arg0: i32, %arg1: i32) -> (i32, i32) {
    %c0_i32 = arith.constant 0 : i32
    %c0_i32_0 = arith.constant 0 : i32
    return %c0_i32, %arg0 : i32, i32
  }
}

</mosaic_0001>

<llo_original>
// kernel: tpu_custom_call.1
$region0: #{tpu_custom_call.1}
  #allocation0 [shape = 'u32[]', space=smem, size = 0x4, offset = 0x4, fixed_abs, tag = 'smem constant byte address 0x4 - core index']
  #allocation1 [shape = 'u32[144,128]{1,0:T(1,128)}', space=vmem, size = 0x12000, scoped, tag = 'internal scratch']
  #allocation2 [shape = 'f32[8,128]{1,0:T(8,128)}', space=vmem, size = 0x1000, scoped, tag = 'scratch operand']
  %s0 = inlined_call_operand.vmem [shape: s32[1,18], index: 0, kind: input, shape index: {}]
  %s1 = inlined_call_operand.vmem [shape: f32[8,1], index: 1, kind: input, shape index: {}]
  %s2 = inlined_call_operand.hbm [shape: f32[18,128], index: 2, kind: input, shape index: {}]
  %s3 = inlined_call_operand.hbm [shape: f32[8,128], index: 3, kind: output, shape index: {}]
  %s4 = sld [smem:[#allocation0]]
  $region34: #{tpu_custom_call.1} parent=0
    _
  %s6 = ssub.s32 1, %s4
  %s7 = scalar_select 0, %s6, %s4
  $region1: #{tpu_custom_call.1} parent=0
    #allocation3 [shape = 'u8[12288]{0}', space=vmem, size = 0x3000, scoped, tag = 'input window, operand 2, single buffered']
    #allocation4 [shape = 's32[1]{0}', space=sflag, size = 0x4, scoped, tag = 'scoped memory for tpu_custom_call.1']
    #allocation5 [shape = 's32[1]{0}', space=sflag, size = 0x4, scoped, tag = 'scoped memory for tpu_custom_call.1']
    #allocation6 [shape = 'u8[4096]{0}', space=vmem, size = 0x1000, scoped, tag = 'output window, operand 0, single buffered']
    %8 = vsyncpa [#allocation4], 0
    %9 = vsyncpa [#allocation5], 0
    // Predicated region
    $region2: #{tpu_custom_call.1} parent=1 // pred_check
      _
    $region3: #{tpu_custom_call.1} parent=1 // pred_check_branch
      %11 = sbr.rel (0) target = $region5
    $region4: #{tpu_custom_call.1} parent=1 // pred_region
      _
    $region5: #{tpu_custom_call.1} parent=1 // pred_fallthru
      _
    // Predicated region
    $region6: #{tpu_custom_call.1} parent=1 // pred_check
      _
    $region7: #{tpu_custom_call.1} parent=1 // pred_check_branch
      %13 = sbr.rel (0) target = $region9
    $region8: #{tpu_custom_call.1} parent=1 // pred_region
      _
    $region9: #{tpu_custom_call.1} parent=1 // pred_fallthru
      _
    // Predicated region
    $region10: #{tpu_custom_call.1} parent=1 // pred_check
      _
    $region11: #{tpu_custom_call.1} parent=1 // pred_check_branch
      %15 = sbr.rel (0) target = $region13
    $region12: #{tpu_custom_call.1} parent=1 // pred_region
      %s17 = ssub.s32 384, 384
      %18 = vsyncadd [#allocation4], %s17
      %s19 = sshll.u32 [#allocation3], 4
      %s20 = int_to_ptr.vmem [resolvable:$true] %s19
      %25 = dma.hbm_to_vmem [thread:$0]  %s2, 384, %s20, [#allocation4], 128, 128, 8
    $region13: #{tpu_custom_call.1} parent=1 // pred_fallthru
      _
    // Predicated region
    $region14: #{tpu_custom_call.1} parent=1 // pred_check
      _
    $region15: #{tpu_custom_call.1} parent=1 // pred_check_branch
      %27 = sbr.rel (0) target = $region17
    $region16: #{tpu_custom_call.1} parent=1 // pred_region
      %28 = dma.done [#allocation4], 384
    $region17: #{tpu_custom_call.1} parent=1 // pred_fallthru
      _
    %p29 = scmp.eq.s32.totalorder 0, 0
    // Predicated region
    $region18: #{tpu_custom_call.1} parent=1 // pred_check
      %p30 = pneg %p29
    $region19: #{tpu_custom_call.1} parent=1 // pred_check_branch
      %32 = sbr.rel (%p30) target = $region21
    $region20: #{tpu_custom_call.1} parent=1 // pred_region
      %33 = vst [vmem:[#allocation2] sm:$0xff] 0.0
    $region21: #{tpu_custom_call.1} parent=1 // pred_fallthru
      _
    %v34 = vld [vmem:[%s0] sm:$0x1]
    %v35 = vlaneseq
    %v36 = vshrl.u32 %v35, 7
    %v37 = vlaneseq
    %v38 = vshrl.u32 %v37, 7
    %v39 = vsub.s32 0, %v38
    %v40 = vrot.slane %v34, %v39
    %vm41 = vcmp.eq.s32.totalorder %v40, %v36
    %v42 = vsel %vm41, 1, 0
    %v43 = vcvt.s32.f32 %v42
    %v44 = vld [vmem:[#allocation3] sm:$0xff]
    %v45 = vld [vmem:[#allocation3 + $0x8] sm:$0xff]
    %v46 = vld [vmem:[#allocation3 + $0x10] sm:$0x3]
    %v47 = vld [vmem:[#allocation2] sm:$0xff]
    %vm48 = vcmask 146432
    %v50 = vsel %vm48, %v43, 0
    %vm52 = vcmask 1041408
    %v54 = vsel %vm52, %v46, 0
    %56 = vmatprep.subr.mxu0 0.0
    %57 = vmatpush1.msra.mxu0 %v44
    %58 = vmatprep.subr.mxu0 0.0
    %59 = vmatpush1.msra.mxu0 %v45
    %60 = vmatprep.subr.mxu0 0.0
    %61 = vmatpush1.msra.mxu0 %v54
    %62 = vmatprep.subr.mxu0 0.0
    %63 = vmatpush1.msra.mxu0 0.0
    %64 = vmatprep.subr.mxu0 0.0
    %65 = vmatpush1.msra.mxu0 0.0
    %66 = vmatprep.subr.mxu0 0.0
    %67 = vmatpush1.msra.mxu0 0.0
    %68 = vmatprep.subr.mxu0 0.0
    %69 = vmatpush1.msra.mxu0 0.0
    %70 = vmatprep.subr.mxu0 0.0
    %71 = vmatpush1.msra.mxu0 0.0
    %72 = vmatprep.subr.mxu0 0.0
    %73 = vmatpush1.msra.mxu0 0.0
    %74 = vmatprep.subr.mxu0 0.0
    %75 = vmatpush1.msra.mxu0 0.0
    %76 = vmatprep.subr.mxu0 0.0
    %77 = vmatpush1.msra.mxu0 0.0
    %78 = vmatprep.subr.mxu0 0.0
    %79 = vmatpush1.msra.mxu0 0.0
    %80 = vmatprep.subr.mxu0 0.0
    %81 = vmatpush1.msra.mxu0 0.0
    %82 = vmatprep.subr.mxu0 0.0
    %83 = vmatpush1.msra.mxu0 0.0
    %84 = vmatprep.subr.mxu0 0.0
    %85 = vmatpush1.msra.mxu0 0.0
    %86 = vmatprep.subr.mxu0 0.0
    %87 = vmatpush1.msra.mxu0 0.0
    %88 = vmatprep.subr.mxu0 0.0
    %89 = vmatpush1.msra.mxu0 0.0
    %90 = vmatprep.subr.mxu0 0.0
    %91 = vmatpush1.msra.mxu0 0.0
    %92 = vmatprep.subr.mxu0 0.0
    %93 = vmatpush1.msra.mxu0 0.0
    %94 = vmatprep.subr.mxu0 0.0
    %95 = vmatpush1.msra.mxu0 0.0
    %96 = vmatprep.subr.mxu0 0.0
    %97 = vmatpush1.msra.mxu0 0.0
    %98 = vmatprep.subr.mxu0 0.0
    %99 = vmatpush1.msra.mxu0 0.0
    %100 = vmatprep.subr.mxu0 0.0
    %101 = vmatpush1.msra.mxu0 0.0
    %102 = vmatprep.subr.mxu0 0.0
    %103 = vmatpush1.msra.mxu0 0.0
    %104 = vmatprep.subr.mxu0 0.0
    %105 = vmatpush1.msra.mxu0 0.0
    %106 = vmatprep.subr.mxu0 0.0
    %107 = vmatpush1.msra.mxu0 0.0
    %108 = vmatprep.subr.mxu0 0.0
    %109 = vmatpush1.msra.mxu0 0.0
    %110 = vmatprep.subr.mxu0 0.0
    %111 = vmatpush1.msra.mxu0 0.0
    %112 = vmatprep.subr.mxu0 0.0
    %113 = vmatpush1.msra.mxu0 0.0
    %114 = vmatprep.subr.mxu0 0.0
    %115 = vmatpush1.msra.mxu0 0.0
    %116 = vmatprep.subr.mxu0 0.0
    %117 = vmatpush1.msra.mxu0 0.0
    %118 = vmatprep.subr.mxu0 0.0
    %119 = vmatpush1.msra.mxu0 0.0
    %120 = vmatprep.mubr.f32.mxu0 0.0
    %121 = vmatmul.mubr.f32.gmra.mrb[0].mxu0 %v50
    %v122 = vpop.f32.mrb[0].mxu0
    %v123 = vadd.f32 0.0, %v122
    %v124 = vpop.f32.mrb[0].mxu0
    %125 = vdwg.mxu0
    %v126 = vadd.f32 %v47, %v123
    %127 = vst [vmem:[#allocation2] sm:$0xff] %v126
    // Predicated region
    $region22: #{tpu_custom_call.1} parent=1 // pred_check
      %p128 = pneg %p29
    $region23: #{tpu_custom_call.1} parent=1 // pred_check_branch
      %130 = sbr.rel (%p128) target = $region25
    $region24: #{tpu_custom_call.1} parent=1 // pred_region
      %v131 = vld [vmem:[#allocation2] sm:$0xff]
      %v132 = vld [vmem:[%s1] sm:$0xff]
      %134 = vset.pattern.permute.xlu0 0
      %135 = vperm.xlu0 %134, %v132
      %v136 = vpop.permute.xlu0 %135
      %v138 = vmul.f32 %v131, %v136
      %139 = vst [vmem:[#allocation6] sm:$0xff] %v138
    $region25: #{tpu_custom_call.1} parent=1 // pred_fallthru
      _
    // Predicated region
    $region26: #{tpu_custom_call.1} parent=1 // pred_check
      _
    $region27: #{tpu_custom_call.1} parent=1 // pred_check_branch
      %141 = sbr.rel (0) target = $region29
    $region28: #{tpu_custom_call.1} parent=1 // pred_region
      %s143 = ssub.s32 128, 128
      %144 = vsyncadd [#allocation5], %s143
      %s146 = sshll.u32 [#allocation6], 4
      %s147 = int_to_ptr.vmem [resolvable:$true] %s146
      %149 = dma.vmem_to_hbm [thread:$0]  %s147, 128, %s3, [#allocation5]
    $region29: #{tpu_custom_call.1} parent=1 // pred_fallthru
      _
    // Predicated region
    $region30: #{tpu_custom_call.1} parent=1 // pred_check
      _
    $region31: #{tpu_custom_call.1} parent=1 // pred_check_branch
      %151 = sbr.rel (0) target = $region33
    $region32: #{tpu_custom_call.1} parent=1 // pred_region
      %152 = dma.done [#allocation5], 128
    $region33: #{tpu_custom_call.1} parent=1 // pred_fallthru
      _
    %153 = vsyncpa [#allocation4], 1
    %154 = vsyncpa [#allocation5], 1

</llo_original>
